<compile_context>
chip_gen: v5e
topology: v5e:2x2
jax: 0.10.0
libtpu: 0.0.40
codegen_flags: <defaults>
</compile_context>

<pallas_src>
import functools

import jax
import jax.numpy as jnp
from jax.experimental import pallas as pl
from jax.experimental.pallas import tpu as pltpu


def _conv_bn_relu_kernel(x_ref, w_ref, shift_ref, o_ref, *, use_mxu):
    # x_ref:     (nb, Cin, tile)   activations, DHW on the lane axis
    # w_ref:     (Cout, Cin)       1x1x1 conv weight with BN scale folded in
    # shift_ref: (Cout, 1)         folded BN shift (+ conv bias), f32
    # o_ref:     (nb, Cout, tile)  lane-dense output block
    nb, cin, _ = x_ref.shape
    shift = shift_ref[...]                                   # (Cout, 1), f32 (hoisted)

    if use_mxu:
        # Large channel counts: contract over Cin on the MXU, f32 accumulation.
        # Weight/activations stay in their native dtype (bf16 stays bf16).
        w = w_ref[...]
        for b in range(nb):                                   # static unroll; nb is small
            acc = jax.lax.dot_general(
                w, x_ref[b],
                dimension_numbers=(((1,), (0,)), ((), ())),
                preferred_element_type=jnp.float32)           # (Cout, tile)
            o_ref[b] = jnp.maximum(acc + shift, 0.0).astype(o_ref.dtype)
    else:
        # Tiny Cin/Cout: unrolled broadcast FMAs on the VPU, vectorized over the batch
        # block, so the compute is pure filler under the streaming DMA.
        x = x_ref[...].astype(jnp.float32)                    # (nb, Cin, tile)
        w = w_ref[...].astype(jnp.float32)                    # (Cout, Cin)
        acc = w[None, :, 0:1] * x[:, 0:1, :]                  # (nb, Cout, tile)
        for ci in range(1, cin):
            acc = acc + w[None, :, ci:ci + 1] * x[:, ci:ci + 1, :]
        y = acc + shift[None, :, :]
        o_ref[...] = jnp.maximum(y, 0.0).astype(o_ref.dtype)


def _tpu_generation():
    """Best-effort TPU generation (4/5/6/7); 0 if unknown."""
    try:
        kind = jax.devices()[0].device_kind.lower()
    except Exception:
        return 0
    for gen in (7, 6, 5, 4):
        if f"v{gen}" in kind:
            return gen
    return 0


def _vmem_physical_bytes(gen):
    try:
        return int(pltpu.get_tpu_info().vmem_capacity_bytes)
    except Exception:
        if gen in (4, 5, 6):
            return 128 * 1024 * 1024
        return 64 * 1024 * 1024      # conservative (v7x-sized) default


@functools.partial(jax.jit, static_argnames=("eps",))
def basic_conv3d(x, weight, bias, gamma, beta, running_mean, running_var, eps=1e-5):
    """x: (N, Cin, D, H, W); weight: (Cout, Cin, 1, 1, 1); bias may be None."""
    N, Cin, D, H, W = x.shape
    Cout = weight.shape[0]
    L = D * H * W
    itemsize = jnp.dtype(x.dtype).itemsize

    gen = _tpu_generation()
    vmem_phys = _vmem_physical_bytes(gen)
    # Scoped VMEM budget for the pipelined blocks: ~45 MiB on v7x (64 MiB physical),
    # up to ~90 MiB on v5e/v6e (128 MiB physical).
    vmem_budget = min(int(vmem_phys * 0.70), 96 * 1024 * 1024)

    # VPU-vs-MXU crossover, generation aware (fast-HBM v7x flips to VALU-bound ~Cin=8;
    # slower-HBM v5e/v6e keep the VPU filler free up to larger Cin).
    mxu_threshold = 6 if gen >= 7 else 16
    use_mxu = Cin > mxu_threshold

    # Fold conv bias + eval-mode BatchNorm: scale goes into the weight, shift stays.
    inv_std = 1.0 / jnp.sqrt(running_var.astype(jnp.float32) + eps)
    s = gamma.astype(jnp.float32) * inv_std                                  # (Cout,)
    b32 = jnp.zeros((Cout,), jnp.float32) if bias is None else bias.astype(jnp.float32)
    w2d = weight.reshape(Cout, Cin).astype(jnp.float32) * s[:, None]         # BN scale folded
    shift = (beta.astype(jnp.float32)
             + (b32 - running_mean.astype(jnp.float32)) * s).reshape(Cout, 1)
    # MXU path keeps the activation dtype through the matmul; VPU path upcasts in-kernel.
    w_arr = w2d.astype(x.dtype) if use_mxu else w2d
    w_bytes = Cout * Cin * jnp.dtype(w_arr.dtype).itemsize + Cout * 4

    # Layout-preserving reshape: NCDHW -> (N, Cin, L).  No transpose, no pad.
    xr = x.reshape(N, Cin, L)

    # ---- Adaptive tile / batch-block selection (channel- and generation-aware) ----
    target_step_bytes = 4 << 20          # aim ~4 MiB of HBM traffic per grid step
    row_bytes = (Cin + Cout) * itemsize  # bytes per lane column per batch entry

    # Lane tile: multiple of 128 (or the full <=128 extent); ragged last tile is masked.
    if L <= 128:
        tile = L
    else:
        tile = max(128, (target_step_bytes // row_bytes) // 128 * 128)
        tile = min(tile, (L // 128) * 128)

    # Batch block: if L alone cannot reach the per-step target, batch rows per step.
    nb = 1
    if N > 1:
        nb = int(target_step_bytes // max(1, row_bytes * tile))
        nb = max(1, min(nb, N, 8 if use_mxu else 32))

    def step_vmem(nb_, t_):
        # double-buffered input+output blocks + resident weight/shift
        return 2 * nb_ * row_bytes * t_ + w_bytes

    # Fit the double-buffered blocks in the generation-aware VMEM budget.
    budget = int(vmem_budget * 0.9)
    while step_vmem(nb, tile) > budget and nb > 1:
        nb //= 2
    while step_vmem(nb, tile) > budget and tile > 128:
        new_tile = max(128, (tile // 2) // 128 * 128)
        if new_tile == tile:
            break
        tile = new_tile

    # Megacore (v7x: 2 TCs share the grid): keep a few grid steps when we can do so
    # without dropping per-step traffic below ~1 MiB.
    min_step_bytes = 1 << 20
    while pl.cdiv(N, nb) * pl.cdiv(L, tile) < 4:
        if nb > 1 and (nb // 2) * row_bytes * tile >= min_step_bytes:
            nb //= 2
        elif tile > 128 and nb * row_bytes * (tile // 2) >= min_step_bytes:
            new_tile = max(128, (tile // 2) // 128 * 128)
            if new_tile == tile:
                break
            tile = new_tile
        else:
            break

    grid = (pl.cdiv(N, nb), pl.cdiv(L, tile))
    vmem_limit = int(max(32 * 1024 * 1024, vmem_budget, step_vmem(nb, tile) * 1.25))

    kernel = functools.partial(_conv_bn_relu_kernel, use_mxu=use_mxu)
    out = pl.pallas_call(
        kernel,
        out_shape=jax.ShapeDtypeStruct((N, Cout, L), x.dtype),
        grid_spec=pltpu.PrefetchScalarGridSpec(
            num_scalar_prefetch=0,
            grid=grid,
            in_specs=[
                pl.BlockSpec((nb, Cin, tile), lambda i, j: (i, 0, j)),
                pl.BlockSpec((Cout, Cin), lambda i, j: (0, 0)),
                pl.BlockSpec((Cout, 1), lambda i, j: (0, 0)),
            ],
            out_specs=pl.BlockSpec((nb, Cout, tile), lambda i, j: (i, 0, j)),
        ),
        compiler_params=pltpu.CompilerParams(
            dimension_semantics=("parallel", "parallel"),
            vmem_limit_bytes=vmem_limit),
    )(xr, w_arr, shift)

    # Layout-preserving reshape back: (N, Cout, L) -> NCDHW.
    return out.reshape(N, Cout, D, H, W)


if __name__ == "__main__":
    key = jax.random.PRNGKey(0)
    k_x, k_w, k_b, k_g, k_be, k_m, k_v = jax.random.split(key, 7)

    N, Cin, Cout = 2, 4, 8
    D = H = W = 8

    x = jax.random.normal(k_x, (N, Cin, D, H, W), dtype=jnp.float32)
    weight = jax.random.normal(k_w, (Cout, Cin, 1, 1, 1), dtype=jnp.float32) * 0.1
    bias = jax.random.normal(k_b, (Cout,), dtype=jnp.float32) * 0.1
    gamma = jax.random.normal(k_g, (Cout,), dtype=jnp.float32) * 0.1 + 1.0
    beta = jax.random.normal(k_be, (Cout,), dtype=jnp.float32) * 0.1
    running_mean = jax.random.normal(k_m, (Cout,), dtype=jnp.float32) * 0.1
    running_var = jax.random.uniform(k_v, (Cout,), dtype=jnp.float32,
                                     minval=0.5, maxval=1.5)

    y = basic_conv3d(x, weight, bias, gamma, beta, running_mean, running_var)
    y = jax.block_until_ready(y)

    # Pure-JAX reference (1x1x1 conv == channel matmul) for sanity.
    ref = jnp.einsum("ncdhw,oc->nodhw", x, weight.reshape(Cout, Cin),
                     precision=jax.lax.Precision.HIGHEST)
    ref = ref + bias[None, :, None, None, None]
    ref = (ref - running_mean[None, :, None, None, None]) / jnp.sqrt(
        running_var[None, :, None, None, None] + 1e-5)
    ref = ref * gamma[None, :, None, None, None] + beta[None, :, None, None, None]
    ref = jnp.maximum(ref, 0.0)

    assert y.shape == (N, Cout, D, H, W)
    # BN scale is folded into the weight, so allow last-ulp-level differences.
    assert jnp.allclose(y, ref, atol=1e-4, rtol=1e-4)

    print("KERNEL_OK")
</pallas_src>

<mosaic_0001>
module attributes {stable_mosaic.version = 11 : i64} {
  func.func @_conv_bn_relu_kernel(%arg0: i32, %arg1: i32, %arg2: memref<2x4x512xf32, #tpu.memory_space<vmem>>, %arg3: memref<8x4xf32, #tpu.memory_space<vmem>>, %arg4: memref<8x1xf32, #tpu.memory_space<vmem>>, %arg5: memref<2x8x512xf32, #tpu.memory_space<vmem>>) attributes {dimension_semantics = [#tpu.dimension_semantics<parallel>, #tpu.dimension_semantics<parallel>], iteration_bounds = array<i64: 1, 1>, scalar_prefetch = 0 : i64, scratch_operands = 0 : i64, tpu.core_type = #tpu.core_type<tc>, window_params = [{transform_indices = @transform_0, window_bounds = array<i64: 2, 4, 512>}, {pipeline_mode = #tpu.pipeline_mode<synchronous>, transform_indices = @transform_1, window_bounds = array<i64: 8, 4>}, {pipeline_mode = #tpu.pipeline_mode<synchronous>, transform_indices = @transform_2, window_bounds = array<i64: 8, 1>}, {transform_indices = @transform_3, window_bounds = array<i64: 2, 8, 512>}]} {
    %c0 = arith.constant 0 : index
    %c0_0 = arith.constant 0 : index
    %0 = vector.load %arg4[%c0, %c0_0] : memref<8x1xf32, #tpu.memory_space<vmem>>, vector<8x1xf32>
    %c0_1 = arith.constant 0 : index
    %c0_2 = arith.constant 0 : index
    %c0_3 = arith.constant 0 : index
    %1 = vector.load %arg2[%c0_1, %c0_2, %c0_3] : memref<2x4x512xf32, #tpu.memory_space<vmem>>, vector<2x4x512xf32>
    %c0_4 = arith.constant 0 : index
    %c0_5 = arith.constant 0 : index
    %2 = vector.load %arg3[%c0_4, %c0_5] : memref<8x4xf32, #tpu.memory_space<vmem>>, vector<8x4xf32>
    %3 = vector.extract_strided_slice %2 {offsets = [0, 0], sizes = [8, 1], strides = [1, 1]} : vector<8x4xf32> to vector<8x1xf32>
    %4 = vector.shape_cast %3 : vector<8x1xf32> to vector<1x8x1xf32>
    %5 = vector.extract_strided_slice %1 {offsets = [0, 0, 0], sizes = [2, 1, 512], strides = [1, 1, 1]} : vector<2x4x512xf32> to vector<2x1x512xf32>
    %6 = vector.broadcast %4 : vector<1x8x1xf32> to vector<2x8x512xf32>
    %7 = vector.broadcast %5 : vector<2x1x512xf32> to vector<2x8x512xf32>
    %8 = arith.mulf %6, %7 : vector<2x8x512xf32>
    %9 = vector.extract_strided_slice %2 {offsets = [0, 1], sizes = [8, 1], strides = [1, 1]} : vector<8x4xf32> to vector<8x1xf32>
    %10 = vector.shape_cast %9 : vector<8x1xf32> to vector<1x8x1xf32>
    %11 = vector.extract_strided_slice %1 {offsets = [0, 1, 0], sizes = [2, 1, 512], strides = [1, 1, 1]} : vector<2x4x512xf32> to vector<2x1x512xf32>
    %12 = vector.broadcast %10 : vector<1x8x1xf32> to vector<2x8x512xf32>
    %13 = vector.broadcast %11 : vector<2x1x512xf32> to vector<2x8x512xf32>
    %14 = arith.mulf %12, %13 : vector<2x8x512xf32>
    %15 = arith.addf %8, %14 : vector<2x8x512xf32>
    %16 = vector.extract_strided_slice %2 {offsets = [0, 2], sizes = [8, 1], strides = [1, 1]} : vector<8x4xf32> to vector<8x1xf32>
    %17 = vector.shape_cast %16 : vector<8x1xf32> to vector<1x8x1xf32>
    %18 = vector.extract_strided_slice %1 {offsets = [0, 2, 0], sizes = [2, 1, 512], strides = [1, 1, 1]} : vector<2x4x512xf32> to vector<2x1x512xf32>
    %19 = vector.broadcast %17 : vector<1x8x1xf32> to vector<2x8x512xf32>
    %20 = vector.broadcast %18 : vector<2x1x512xf32> to vector<2x8x512xf32>
    %21 = arith.mulf %19, %20 : vector<2x8x512xf32>
    %22 = arith.addf %15, %21 : vector<2x8x512xf32>
    %23 = vector.extract_strided_slice %2 {offsets = [0, 3], sizes = [8, 1], strides = [1, 1]} : vector<8x4xf32> to vector<8x1xf32>
    %24 = vector.shape_cast %23 : vector<8x1xf32> to vector<1x8x1xf32>
    %25 = vector.extract_strided_slice %1 {offsets = [0, 3, 0], sizes = [2, 1, 512], strides = [1, 1, 1]} : vector<2x4x512xf32> to vector<2x1x512xf32>
    %26 = vector.broadcast %24 : vector<1x8x1xf32> to vector<2x8x512xf32>
    %27 = vector.broadcast %25 : vector<2x1x512xf32> to vector<2x8x512xf32>
    %28 = arith.mulf %26, %27 : vector<2x8x512xf32>
    %29 = arith.addf %22, %28 : vector<2x8x512xf32>
    %30 = vector.shape_cast %0 : vector<8x1xf32> to vector<1x8x1xf32>
    %31 = vector.broadcast %30 : vector<1x8x1xf32> to vector<2x8x512xf32>
    %32 = arith.addf %29, %31 : vector<2x8x512xf32>
    %cst = arith.constant 0.000000e+00 : f32
    %33 = vector.broadcast %cst : f32 to vector<2x8x512xf32>
    %34 = arith.maximumf %32, %33 : vector<2x8x512xf32>
    %c0_6 = arith.constant 0 : index
    %c0_7 = arith.constant 0 : index
    %c0_8 = arith.constant 0 : index
    %35 = vector.load %arg5[%c0_6, %c0_7, %c0_8] : memref<2x8x512xf32, #tpu.memory_space<vmem>>, vector<2x8x512xf32>
    tpu.vector_store %arg5[%c0_6, %c0_7, %c0_8], %34 {strides = array<i32>} : memref<2x8x512xf32, #tpu.memory_space<vmem>>, vector<2x8x512xf32>,
    return
  }
  func.func @transform_0(%arg0: i32, %arg1: i32) -> (i32, i32, i32) {
    %c0_i32 = arith.constant 0 : i32
    %c0_i32_0 = arith.constant 0 : i32
    return %arg0, %c0_i32, %arg1 : i32, i32, i32
  }
  func.func @transform_1(%arg0: i32, %arg1: i32) -> (i32, i32) {
    %c0_i32 = arith.constant 0 : i32
    %c0_i32_0 = arith.constant 0 : i32
    %c0_i32_1 = arith.constant 0 : i32
    return %c0_i32, %c0_i32_0 : i32, i32
  }
  func.func @transform_2(%arg0: i32, %arg1: i32) -> (i32, i32) {
    %c0_i32 = arith.constant 0 : i32
    %c0_i32_0 = arith.constant 0 : i32
    %c0_i32_1 = arith.constant 0 : i32
    return %c0_i32, %c0_i32_0 : i32, i32
  }
  func.func @transform_3(%arg0: i32, %arg1: i32) -> (i32, i32, i32) {
    %c0_i32 = arith.constant 0 : i32
    %c0_i32_0 = arith.constant 0 : i32
    return %arg0, %c0_i32, %arg1 : i32, i32, i32
  }
}

</mosaic_0001>

<llo_original>
// kernel: basic_conv3d.1
$region0: #{basic_conv3d.1}
  #allocation0 [shape = 'u32[]', space=smem, size = 0x4, offset = 0x4, fixed_abs, tag = 'smem constant byte address 0x4 - core index']
  #allocation1 [shape = 'u32[72,128]{1,0:T(1,128)}', space=vmem, size = 0x9000, scoped, tag = 'internal scratch']
  %s0 = inlined_call_operand.vmem [shape: f32[2,4,512], index: 0, kind: input, shape index: {}]
  %s1 = inlined_call_operand.vmem [shape: f32[8,4], index: 1, kind: input, shape index: {}]
  %s2 = inlined_call_operand.vmem [shape: f32[8,1], index: 2, kind: input, shape index: {}]
  %s3 = inlined_call_operand.vmem [shape: f32[2,8,512], index: 3, kind: output, shape index: {}]
  %s4 = sld [smem:[#allocation0]]
  $region22: #{basic_conv3d.1} parent=0
    _
  %s6 = ssub.s32 1, %s4
  %s7 = scalar_select 0, %s6, %s4
  // Predicated region
  $region2: #{basic_conv3d.1} parent=0 // pred_check
    _
  $region3: #{basic_conv3d.1} parent=0 // pred_check_branch
    %9 = sbr.rel (0) target = $region5
  $region4: #{basic_conv3d.1} parent=0 // pred_region
    _
  $region5: #{basic_conv3d.1} parent=0 // pred_fallthru
    _
  // Predicated region
  $region6: #{basic_conv3d.1} parent=0 // pred_check
    _
  $region7: #{basic_conv3d.1} parent=0 // pred_check_branch
    %11 = sbr.rel (0) target = $region9
  $region8: #{basic_conv3d.1} parent=0 // pred_region
    _
  $region9: #{basic_conv3d.1} parent=0 // pred_fallthru
    _
  // Predicated region
  $region10: #{basic_conv3d.1} parent=0 // pred_check
    _
  $region11: #{basic_conv3d.1} parent=0 // pred_check_branch
    %13 = sbr.rel (0) target = $region13
  $region12: #{basic_conv3d.1} parent=0 // pred_region
    _
  $region13: #{basic_conv3d.1} parent=0 // pred_fallthru
    _
  %v14 = vld [vmem:[%s2] sm:$0xff]
  %v15 = vld [vmem:[%s0] sm:$0xff]
  %v16 = vld [vmem:[%s0 + $0x8] sm:$0xff]
  %v17 = vld [vmem:[%s0 + $0x10] sm:$0xff]
  %v18 = vld [vmem:[%s0 + $0x18] sm:$0xff]
  %v19 = vld [vmem:[%s1] sm:$0xff]
  %21 = vset.pattern.permute.xlu0 0
  %22 = vperm.xlu0 %21, %v19
  %v23 = vpop.permute.xlu0 %22
  %v29 = vperm.slane %v15, 0
  %v30 = vperm.slane %v15, 4
  %v31 = vperm.slane %v16, 0
  %v32 = vperm.slane %v16, 4
  %v33 = vperm.slane %v17, 0
  %v34 = vperm.slane %v17, 4
  %v35 = vperm.slane %v18, 0
  %v36 = vperm.slane %v18, 4
  %v45 = vperm.slane %v29, 0
  %v46 = vperm.slane %v30, 0
  %v47 = vperm.slane %v31, 0
  %v48 = vperm.slane %v32, 0
  %v49 = vperm.slane %v33, 0
  %v50 = vperm.slane %v34, 0
  %v51 = vperm.slane %v35, 0
  %v52 = vperm.slane %v36, 0
  %v53 = vmul.f32 %v23, %v45
  %v54 = vmul.f32 %v23, %v46
  %v55 = vmul.f32 %v23, %v47
  %v56 = vmul.f32 %v23, %v48
  %v57 = vmul.f32 %v23, %v49
  %v58 = vmul.f32 %v23, %v50
  %v59 = vmul.f32 %v23, %v51
  %v60 = vmul.f32 %v23, %v52
  %61 = vset.pattern.permute.xlu0 1
  %62 = vperm.xlu0 %61, %v19
  %v63 = vpop.permute.xlu0 %62
  %v65 = vperm.slane %v15, 1
  %v66 = vperm.slane %v15, 5
  %v67 = vperm.slane %v16, 1
  %v68 = vperm.slane %v16, 5
  %v69 = vperm.slane %v17, 1
  %v70 = vperm.slane %v17, 5
  %v71 = vperm.slane %v18, 1
  %v72 = vperm.slane %v18, 5
  %v81 = vperm.slane %v65, 1
  %v82 = vperm.slane %v66, 1
  %v83 = vperm.slane %v67, 1
  %v84 = vperm.slane %v68, 1
  %v85 = vperm.slane %v69, 1
  %v86 = vperm.slane %v70, 1
  %v87 = vperm.slane %v71, 1
  %v88 = vperm.slane %v72, 1
  %v89 = vmul.f32 %v63, %v81
  %v90 = vmul.f32 %v63, %v82
  %v91 = vmul.f32 %v63, %v83
  %v92 = vmul.f32 %v63, %v84
  %v93 = vmul.f32 %v63, %v85
  %v94 = vmul.f32 %v63, %v86
  %v95 = vmul.f32 %v63, %v87
  %v96 = vmul.f32 %v63, %v88
  %v97 = vadd.f32 %v53, %v89
  %v98 = vadd.f32 %v54, %v90
  %v99 = vadd.f32 %v55, %v91
  %v100 = vadd.f32 %v56, %v92
  %v101 = vadd.f32 %v57, %v93
  %v102 = vadd.f32 %v58, %v94
  %v103 = vadd.f32 %v59, %v95
  %v104 = vadd.f32 %v60, %v96
  %105 = vset.pattern.permute.xlu0 2
  %106 = vperm.xlu0 %105, %v19
  %v107 = vpop.permute.xlu0 %106
  %v109 = vperm.slane %v15, 2
  %v110 = vperm.slane %v15, 6
  %v111 = vperm.slane %v16, 2
  %v112 = vperm.slane %v16, 6
  %v113 = vperm.slane %v17, 2
  %v114 = vperm.slane %v17, 6
  %v115 = vperm.slane %v18, 2
  %v116 = vperm.slane %v18, 6
  %v125 = vperm.slane %v109, 2
  %v126 = vperm.slane %v110, 2
  %v127 = vperm.slane %v111, 2
  %v128 = vperm.slane %v112, 2
  %v129 = vperm.slane %v113, 2
  %v130 = vperm.slane %v114, 2
  %v131 = vperm.slane %v115, 2
  %v132 = vperm.slane %v116, 2
  %v133 = vmul.f32 %v107, %v125
  %v134 = vmul.f32 %v107, %v126
  %v135 = vmul.f32 %v107, %v127
  %v136 = vmul.f32 %v107, %v128
  %v137 = vmul.f32 %v107, %v129
  %v138 = vmul.f32 %v107, %v130
  %v139 = vmul.f32 %v107, %v131
  %v140 = vmul.f32 %v107, %v132
  %v141 = vadd.f32 %v97, %v133
  %v142 = vadd.f32 %v98, %v134
  %v143 = vadd.f32 %v99, %v135
  %v144 = vadd.f32 %v100, %v136
  %v145 = vadd.f32 %v101, %v137
  %v146 = vadd.f32 %v102, %v138
  %v147 = vadd.f32 %v103, %v139
  %v148 = vadd.f32 %v104, %v140
  %149 = vset.pattern.permute.xlu0 3
  %150 = vperm.xlu0 %149, %v19
  %v151 = vpop.permute.xlu0 %150
  %v153 = vperm.slane %v15, 3
  %v154 = vperm.slane %v15, 7
  %v155 = vperm.slane %v16, 3
  %v156 = vperm.slane %v16, 7
  %v157 = vperm.slane %v17, 3
  %v158 = vperm.slane %v17, 7
  %v159 = vperm.slane %v18, 3
  %v160 = vperm.slane %v18, 7
  %v169 = vperm.slane %v153, 3
  %v170 = vperm.slane %v154, 3
  %v171 = vperm.slane %v155, 3
  %v172 = vperm.slane %v156, 3
  %v173 = vperm.slane %v157, 3
  %v174 = vperm.slane %v158, 3
  %v175 = vperm.slane %v159, 3
  %v176 = vperm.slane %v160, 3
  %v177 = vmul.f32 %v151, %v169
  %v178 = vmul.f32 %v151, %v170
  %v179 = vmul.f32 %v151, %v171
  %v180 = vmul.f32 %v151, %v172
  %v181 = vmul.f32 %v151, %v173
  %v182 = vmul.f32 %v151, %v174
  %v183 = vmul.f32 %v151, %v175
  %v184 = vmul.f32 %v151, %v176
  %v185 = vadd.f32 %v141, %v177
  %v186 = vadd.f32 %v142, %v178
  %v187 = vadd.f32 %v143, %v179
  %v188 = vadd.f32 %v144, %v180
  %v189 = vadd.f32 %v145, %v181
  %v190 = vadd.f32 %v146, %v182
  %v191 = vadd.f32 %v147, %v183
  %v192 = vadd.f32 %v148, %v184
  %194 = vset.pattern.permute.xlu0 0
  %195 = vperm.xlu0 %194, %v14
  %v196 = vpop.permute.xlu0 %195
  %v198 = vadd.f32 %v185, %v196
  %v199 = vadd.f32 %v186, %v196
  %v200 = vadd.f32 %v187, %v196
  %v201 = vadd.f32 %v188, %v196
  %v202 = vadd.f32 %v189, %v196
  %v203 = vadd.f32 %v190, %v196
  %v204 = vadd.f32 %v191, %v196
  %v205 = vadd.f32 %v192, %v196
  %v206 = vmax.f32 %v198, 0.0
  %v207 = vmax.f32 %v199, 0.0
  %v208 = vmax.f32 %v200, 0.0
  %v209 = vmax.f32 %v201, 0.0
  %v210 = vmax.f32 %v202, 0.0
  %v211 = vmax.f32 %v203, 0.0
  %v212 = vmax.f32 %v204, 0.0
  %v213 = vmax.f32 %v205, 0.0
  %214 = vst [vmem:[%s3] sm:$0xff] %v206
  %215 = vst [vmem:[%s3 + $0x8] sm:$0xff] %v207
  %216 = vst [vmem:[%s3 + $0x10] sm:$0xff] %v208
  %217 = vst [vmem:[%s3 + $0x18] sm:$0xff] %v209
  %218 = vst [vmem:[%s3 + $0x20] sm:$0xff] %v210
  %219 = vst [vmem:[%s3 + $0x28] sm:$0xff] %v211
  %220 = vst [vmem:[%s3 + $0x30] sm:$0xff] %v212
  %221 = vst [vmem:[%s3 + $0x38] sm:$0xff] %v213
  // Predicated region
  $region14: #{basic_conv3d.1} parent=0 // pred_check
    _
  $region15: #{basic_conv3d.1} parent=0 // pred_check_branch
    %223 = sbr.rel (0) target = $region17
  $region16: #{basic_conv3d.1} parent=0 // pred_region
    _
  $region17: #{basic_conv3d.1} parent=0 // pred_fallthru
    _
  // Predicated region
  $region18: #{basic_conv3d.1} parent=0 // pred_check
    _
  $region19: #{basic_conv3d.1} parent=0 // pred_check_branch
    %225 = sbr.rel (0) target = $region21
  $region20: #{basic_conv3d.1} parent=0 // pred_region
    _
  $region21: #{basic_conv3d.1} parent=0 // pred_fallthru
    _

</llo_original>
